<compile_context>
chip_gen: v7x
topology: tpu7x:2x2x1
jax: 0.10.0
libtpu: 0.0.40
codegen_flags: <defaults>
</compile_context>

<pallas_src>
import functools

import jax
import jax.numpy as jnp
from jax.experimental import pallas as pl
from jax.experimental.pallas import tpu as pltpu


def lstm_fc_kernel(x_ref, params_ref, w_hh_t_ref, out_ref, *,
                   hidden_size, seq_len, use_bf16_gates):
    """Single-layer LSTM over the full sequence + Linear on the last hidden state.

    x_ref      : (B, T)   f32  VMEM  (batch on sublanes, time on lanes)
    params_ref : (8, 4H)  f32  VMEM  packed slab:
                 row 0 = W_ih column (g-block pre-scaled by 2)
                 row 1 = b_ih + b_hh (g-block pre-scaled by 2)
                 row 2 = W_fc row (zero-padded to 4H)
                 row 3 = b_fc at lane 0
    w_hh_t_ref : (H, 4H)  bf16 VMEM  (W_hh^T, g-block pre-scaled by 2)
    out_ref    : (B, 1)   f32  VMEM
    """
    H = hidden_size
    T = seq_len

    x_bt = x_ref[...]                          # (B, T) f32
    B = x_bt.shape[0]

    slab = params_ref[...]                     # (8, 4H) f32 (one vreg at H=32)
    # Hoist the row -> (B, 4H) broadcasts out of the unrolled loop.
    w_ih_b = jnp.broadcast_to(slab[0:1, :], (B, 4 * H))   # (B, 4H)
    bias_b = jnp.broadcast_to(slab[1:2, :], (B, 4 * H))   # (B, 4H)
    w_fc_row = slab[2:3, :H]                   # (1, H)
    b_fc = slab[3:4, 0:1]                      # (1, 1)

    w_hh_t = w_hh_t_ref[...]                   # (H, 4H) bf16, loaded once

    h = jnp.zeros((B, H), dtype=jnp.float32)   # zero initial hidden
    c = jnp.zeros((B, H), dtype=jnp.float32)   # zero initial cell

    # T is tiny & static -> unroll. Per step: one (B,H)x(H,4H) bf16 MXU matmul
    # (f32 accumulate), one full-width sigmoid, one tanh(c). The input
    # projection is recomputed per step instead of kept live across the loop.
    for t in range(T):
        x_t = x_bt[:, t:t + 1]                 # (B, 1): lane splat of column t
        gates = (x_t * w_ih_b + bias_b
                 + jnp.dot(h.astype(jnp.bfloat16), w_hh_t,
                           preferred_element_type=jnp.float32))        # (B, 4H)
        if use_bf16_gates:
            # bf16 EUP (v6e / v7x): half the transcendental pushes per step.
            s = jax.nn.sigmoid(gates.astype(jnp.bfloat16)).astype(jnp.float32)
        else:
            s = jax.nn.sigmoid(gates)          # f32 path (v5e: no bf16 VPU/EUP)
        i_g = s[:, 0 * H:1 * H]
        f_g = s[:, 1 * H:2 * H]
        g_g = 2.0 * s[:, 2 * H:3 * H] - 1.0    # tanh via pre-scaled sigmoid
        o_g = s[:, 3 * H:4 * H]
        c = f_g * c + i_g * g_g                # cell state stays f32
        if use_bf16_gates:
            tanh_c = jnp.tanh(c.astype(jnp.bfloat16)).astype(jnp.float32)
        else:
            tanh_c = jnp.tanh(c)
        h = o_g * tanh_c

    # fc on the last hidden state: output_size == 1 -> VPU mul + lane reduce.
    out = jnp.sum(h * w_fc_row, axis=-1, keepdims=True) + b_fc         # (B, 1)
    out_ref[...] = out.astype(out_ref.dtype)


def prepare_lstm_params(w_ih, w_hh, b_ih, b_hh, w_fc, b_fc):
    """One-time host-side parameter re-layout (hoisted out of the call path)."""
    four_h, in_size = w_ih.shape
    H = four_h // 4
    assert in_size == 1, "kernel specialises the input projection for input_size == 1"
    assert w_fc.shape == (1, H), "kernel specialises the fc epilogue for output_size == 1"
    assert 4 * H == 128, "packed-slab layout assumes 4*hidden_size == 128"
    # TODO(synk): generalize the slab width / fc epilogue for 4H != 128 or output_size > 1.

    # g-gate columns pre-scaled by 2 so tanh(x) = 2*sigmoid(2x) - 1 lets one
    # full-width sigmoid cover all four gates (power-of-two -> exact in bf16).
    scale = jnp.concatenate([jnp.ones((2 * H,), jnp.float32),
                             jnp.full((H,), 2.0, jnp.float32),
                             jnp.ones((H,), jnp.float32)])              # (4H,)

    slab = jnp.zeros((8, 4 * H), jnp.float32)
    slab = slab.at[0, :].set(w_ih[:, 0].astype(jnp.float32) * scale)
    slab = slab.at[1, :].set((b_ih + b_hh).astype(jnp.float32) * scale)
    slab = slab.at[2, :H].set(w_fc[0].astype(jnp.float32))
    slab = slab.at[3, 0].set(b_fc[0].astype(jnp.float32))

    # bf16 operands for the recurrent MXU matmul (f32 accumulate in-kernel).
    w_hh_t = (jnp.transpose(w_hh).astype(jnp.float32)
              * scale[None, :]).astype(jnp.bfloat16)                    # (H, 4H)
    return slab, w_hh_t


@functools.partial(jax.jit, static_argnames=("use_bf16_gates",))
def lstm_model_forward(x, params_slab, w_hh_t, *, use_bf16_gates=False):
    """Jitted forward: (B, T, 1) input + pre-packed params -> (B, 1) output."""
    B, T, I = x.shape
    assert I == 1
    H = w_hh_t.shape[0]

    x_bt = x[:, :, 0].astype(jnp.float32)      # (B, T): no transpose needed

    kernel = functools.partial(lstm_fc_kernel, hidden_size=H, seq_len=T,
                               use_bf16_gates=use_bf16_gates)
    vmem = pl.BlockSpec(memory_space=pltpu.MemorySpace.VMEM)
    return pl.pallas_call(
        kernel,
        out_shape=jax.ShapeDtypeStruct((B, 1), jnp.float32),
        in_specs=[vmem, vmem, vmem],
        out_specs=vmem,
    )(x_bt, params_slab, w_hh_t)


def _bf16_eup_supported():
    """bf16 gate nonlinearities only on chips with a bf16 VPU/EUP (v6e, v7x)."""
    try:
        kind = jax.devices()[0].device_kind.lower()
    except Exception:
        return False
    return ("v6" in kind) or ("v7" in kind)


def lstm_model_ref(x, w_ih, w_hh, b_ih, b_hh, w_fc, b_fc):
    """Pure-JAX f32 reference (PyTorch semantics) for validation."""
    B, T, _ = x.shape
    H = w_hh.shape[1]
    h = jnp.zeros((B, H), jnp.float32)
    c = jnp.zeros((B, H), jnp.float32)
    for t in range(T):
        g = x[:, t, :] @ w_ih.T + b_ih + h @ w_hh.T + b_hh
        i = jax.nn.sigmoid(g[:, 0 * H:1 * H])
        f = jax.nn.sigmoid(g[:, 1 * H:2 * H])
        gg = jnp.tanh(g[:, 2 * H:3 * H])
        o = jax.nn.sigmoid(g[:, 3 * H:4 * H])
        c = f * c + i * gg
        h = o * jnp.tanh(c)
    return h @ w_fc.T + b_fc


if __name__ == "__main__":
    # Shapes implied by the script: x = (32, 6, 1), hidden=32, input_size=1,
    # num_layers=1, unidirectional, output_size=1.
    B, T, I = 32, 6, 1
    H, O = 32, 1

    key = jax.random.PRNGKey(0)
    k_x, k1, k2, k3, k4, k5, k6 = jax.random.split(key, 7)

    s = 1.0 / jnp.sqrt(jnp.float32(H))
    x = jax.random.normal(k_x, (B, T, I), dtype=jnp.float32)
    w_ih = jax.random.uniform(k1, (4 * H, I), jnp.float32, -s, s)   # weight_ih_l0
    w_hh = jax.random.uniform(k2, (4 * H, H), jnp.float32, -s, s)   # weight_hh_l0
    b_ih = jax.random.uniform(k3, (4 * H,), jnp.float32, -s, s)
    b_hh = jax.random.uniform(k4, (4 * H,), jnp.float32, -s, s)
    w_fc = jax.random.uniform(k5, (O, H), jnp.float32, -s, s)       # fc.weight
    b_fc = jax.random.uniform(k6, (O,), jnp.float32, -s, s)         # fc.bias

    # One-time parameter packing (would be cached across calls in real use).
    params_slab, w_hh_t = prepare_lstm_params(w_ih, w_hh, b_ih, b_hh, w_fc, b_fc)
    use_bf16_gates = _bf16_eup_supported()

    out = lstm_model_forward(x, params_slab, w_hh_t, use_bf16_gates=use_bf16_gates)
    out = jax.block_until_ready(out)
    assert out.shape == (B, O)

    ref = lstm_model_ref(x, w_ih, w_hh, b_ih, b_hh, w_fc, b_fc)
    max_err = float(jnp.max(jnp.abs(out - ref)))
    # Tolerance: recurrent matmul uses bf16 MXU operands (f32 accumulate);
    # slightly looser when gate nonlinearities also run in bf16 (v6e/v7x).
    tol = 1e-1 if use_bf16_gates else 5e-2
    assert max_err < tol, f"max abs error vs f32 reference: {max_err}"

    print("KERNEL_OK")
</pallas_src>

<mosaic_0001>
module attributes {stable_mosaic.version = 11 : i64} {
  func.func @lstm_fc_kernel(%arg0: memref<32x6xf32, #tpu.memory_space<vmem>>, %arg1: memref<8x128xf32, #tpu.memory_space<vmem>>, %arg2: memref<32x128xbf16, #tpu.memory_space<vmem>>, %arg3: memref<32x1xf32, #tpu.memory_space<vmem>>) attributes {dimension_semantics = [], scalar_prefetch = 0 : i64, scratch_operands = 0 : i64, tpu.core_type = #tpu.core_type<tc>} {
    %c0 = arith.constant 0 : index
    %c0_0 = arith.constant 0 : index
    %0 = vector.load %arg0[%c0, %c0_0] : memref<32x6xf32, #tpu.memory_space<vmem>>, vector<32x6xf32>
    %c0_1 = arith.constant 0 : index
    %c0_2 = arith.constant 0 : index
    %1 = vector.load %arg1[%c0_1, %c0_2] : memref<8x128xf32, #tpu.memory_space<vmem>>, vector<8x128xf32>
    %2 = vector.extract_strided_slice %1 {offsets = [0, 0], sizes = [1, 128], strides = [1, 1]} : vector<8x128xf32> to vector<1x128xf32>
    %3 = vector.shape_cast %2 : vector<1x128xf32> to vector<1x128xf32>
    %4 = vector.broadcast %3 : vector<1x128xf32> to vector<32x128xf32>
    %5 = vector.extract_strided_slice %1 {offsets = [1, 0], sizes = [1, 128], strides = [1, 1]} : vector<8x128xf32> to vector<1x128xf32>
    %6 = vector.shape_cast %5 : vector<1x128xf32> to vector<1x128xf32>
    %7 = vector.broadcast %6 : vector<1x128xf32> to vector<32x128xf32>
    %8 = vector.extract_strided_slice %1 {offsets = [2, 0], sizes = [1, 32], strides = [1, 1]} : vector<8x128xf32> to vector<1x32xf32>
    %9 = vector.extract_strided_slice %1 {offsets = [3, 0], sizes = [1, 1], strides = [1, 1]} : vector<8x128xf32> to vector<1x1xf32>
    %c0_3 = arith.constant 0 : index
    %c0_4 = arith.constant 0 : index
    %10 = vector.load %arg2[%c0_3, %c0_4] : memref<32x128xbf16, #tpu.memory_space<vmem>>, vector<32x128xbf16>
    %cst = arith.constant 0.000000e+00 : f32
    %11 = vector.broadcast %cst : f32 to vector<32x32xf32>
    %cst_5 = arith.constant 0.000000e+00 : f32
    %12 = vector.broadcast %cst_5 : f32 to vector<32x32xf32>
    %13 = vector.extract_strided_slice %0 {offsets = [0, 0], sizes = [32, 1], strides = [1, 1]} : vector<32x6xf32> to vector<32x1xf32>
    %14 = vector.broadcast %13 : vector<32x1xf32> to vector<32x128xf32>
    %15 = arith.mulf %14, %4 : vector<32x128xf32>
    %16 = arith.addf %15, %7 : vector<32x128xf32>
    %17 = arith.truncf %11 : vector<32x32xf32> to vector<32x32xbf16>
    %cst_6 = arith.constant dense<0.000000e+00> : vector<32x128xf32>
    %18 = tpu.matmul %17, %10, %cst_6 {dimension_numbers = #tpu.dot_dimension_numbers<[1], [0], [0], [1], [0, 0, 1, 1], [], []>} : vector<32x32xbf16>, vector<32x128xbf16>, vector<32x128xf32> -> vector<32x128xf32>
    %19 = arith.addf %16, %18 : vector<32x128xf32>
    %20 = arith.negf %19 : vector<32x128xf32>
    %21 = math.exp %20 : vector<32x128xf32>
    %cst_7 = arith.constant 1.000000e+00 : f32
    %22 = vector.broadcast %cst_7 : f32 to vector<32x128xf32>
    %23 = arith.addf %22, %21 : vector<32x128xf32>
    %24 = arith.divf %22, %23 : vector<32x128xf32>
    %25 = vector.extract_strided_slice %24 {offsets = [0, 0], sizes = [32, 32], strides = [1, 1]} : vector<32x128xf32> to vector<32x32xf32>
    %26 = vector.extract_strided_slice %24 {offsets = [0, 32], sizes = [32, 32], strides = [1, 1]} : vector<32x128xf32> to vector<32x32xf32>
    %27 = vector.extract_strided_slice %24 {offsets = [0, 64], sizes = [32, 32], strides = [1, 1]} : vector<32x128xf32> to vector<32x32xf32>
    %cst_8 = arith.constant 2.000000e+00 : f32
    %28 = vector.broadcast %cst_8 : f32 to vector<32x32xf32>
    %29 = arith.mulf %28, %27 : vector<32x32xf32>
    %cst_9 = arith.constant 1.000000e+00 : f32
    %30 = vector.broadcast %cst_9 : f32 to vector<32x32xf32>
    %31 = arith.subf %29, %30 : vector<32x32xf32>
    %32 = vector.extract_strided_slice %24 {offsets = [0, 96], sizes = [32, 32], strides = [1, 1]} : vector<32x128xf32> to vector<32x32xf32>
    %33 = arith.mulf %26, %12 : vector<32x32xf32>
    %34 = arith.mulf %25, %31 : vector<32x32xf32>
    %35 = arith.addf %33, %34 : vector<32x32xf32>
    %36 = math.tanh %35 : vector<32x32xf32>
    %37 = arith.mulf %32, %36 : vector<32x32xf32>
    %38 = vector.extract_strided_slice %0 {offsets = [0, 1], sizes = [32, 1], strides = [1, 1]} : vector<32x6xf32> to vector<32x1xf32>
    %39 = vector.broadcast %38 : vector<32x1xf32> to vector<32x128xf32>
    %40 = arith.mulf %39, %4 : vector<32x128xf32>
    %41 = arith.addf %40, %7 : vector<32x128xf32>
    %42 = arith.truncf %37 : vector<32x32xf32> to vector<32x32xbf16>
    %cst_10 = arith.constant dense<0.000000e+00> : vector<32x128xf32>
    %43 = tpu.matmul %42, %10, %cst_10 {dimension_numbers = #tpu.dot_dimension_numbers<[1], [0], [0], [1], [0, 0, 1, 1], [], []>} : vector<32x32xbf16>, vector<32x128xbf16>, vector<32x128xf32> -> vector<32x128xf32>
    %44 = arith.addf %41, %43 : vector<32x128xf32>
    %45 = arith.negf %44 : vector<32x128xf32>
    %46 = math.exp %45 : vector<32x128xf32>
    %cst_11 = arith.constant 1.000000e+00 : f32
    %47 = vector.broadcast %cst_11 : f32 to vector<32x128xf32>
    %48 = arith.addf %47, %46 : vector<32x128xf32>
    %49 = arith.divf %47, %48 : vector<32x128xf32>
    %50 = vector.extract_strided_slice %49 {offsets = [0, 0], sizes = [32, 32], strides = [1, 1]} : vector<32x128xf32> to vector<32x32xf32>
    %51 = vector.extract_strided_slice %49 {offsets = [0, 32], sizes = [32, 32], strides = [1, 1]} : vector<32x128xf32> to vector<32x32xf32>
    %52 = vector.extract_strided_slice %49 {offsets = [0, 64], sizes = [32, 32], strides = [1, 1]} : vector<32x128xf32> to vector<32x32xf32>
    %cst_12 = arith.constant 2.000000e+00 : f32
    %53 = vector.broadcast %cst_12 : f32 to vector<32x32xf32>
    %54 = arith.mulf %53, %52 : vector<32x32xf32>
    %cst_13 = arith.constant 1.000000e+00 : f32
    %55 = vector.broadcast %cst_13 : f32 to vector<32x32xf32>
    %56 = arith.subf %54, %55 : vector<32x32xf32>
    %57 = vector.extract_strided_slice %49 {offsets = [0, 96], sizes = [32, 32], strides = [1, 1]} : vector<32x128xf32> to vector<32x32xf32>
    %58 = arith.mulf %51, %35 : vector<32x32xf32>
    %59 = arith.mulf %50, %56 : vector<32x32xf32>
    %60 = arith.addf %58, %59 : vector<32x32xf32>
    %61 = math.tanh %60 : vector<32x32xf32>
    %62 = arith.mulf %57, %61 : vector<32x32xf32>
    %63 = vector.extract_strided_slice %0 {offsets = [0, 2], sizes = [32, 1], strides = [1, 1]} : vector<32x6xf32> to vector<32x1xf32>
    %64 = vector.broadcast %63 : vector<32x1xf32> to vector<32x128xf32>
    %65 = arith.mulf %64, %4 : vector<32x128xf32>
    %66 = arith.addf %65, %7 : vector<32x128xf32>
    %67 = arith.truncf %62 : vector<32x32xf32> to vector<32x32xbf16>
    %cst_14 = arith.constant dense<0.000000e+00> : vector<32x128xf32>
    %68 = tpu.matmul %67, %10, %cst_14 {dimension_numbers = #tpu.dot_dimension_numbers<[1], [0], [0], [1], [0, 0, 1, 1], [], []>} : vector<32x32xbf16>, vector<32x128xbf16>, vector<32x128xf32> -> vector<32x128xf32>
    %69 = arith.addf %66, %68 : vector<32x128xf32>
    %70 = arith.negf %69 : vector<32x128xf32>
    %71 = math.exp %70 : vector<32x128xf32>
    %cst_15 = arith.constant 1.000000e+00 : f32
    %72 = vector.broadcast %cst_15 : f32 to vector<32x128xf32>
    %73 = arith.addf %72, %71 : vector<32x128xf32>
    %74 = arith.divf %72, %73 : vector<32x128xf32>
    %75 = vector.extract_strided_slice %74 {offsets = [0, 0], sizes = [32, 32], strides = [1, 1]} : vector<32x128xf32> to vector<32x32xf32>
    %76 = vector.extract_strided_slice %74 {offsets = [0, 32], sizes = [32, 32], strides = [1, 1]} : vector<32x128xf32> to vector<32x32xf32>
    %77 = vector.extract_strided_slice %74 {offsets = [0, 64], sizes = [32, 32], strides = [1, 1]} : vector<32x128xf32> to vector<32x32xf32>
    %cst_16 = arith.constant 2.000000e+00 : f32
    %78 = vector.broadcast %cst_16 : f32 to vector<32x32xf32>
    %79 = arith.mulf %78, %77 : vector<32x32xf32>
    %cst_17 = arith.constant 1.000000e+00 : f32
    %80 = vector.broadcast %cst_17 : f32 to vector<32x32xf32>
    %81 = arith.subf %79, %80 : vector<32x32xf32>
    %82 = vector.extract_strided_slice %74 {offsets = [0, 96], sizes = [32, 32], strides = [1, 1]} : vector<32x128xf32> to vector<32x32xf32>
    %83 = arith.mulf %76, %60 : vector<32x32xf32>
    %84 = arith.mulf %75, %81 : vector<32x32xf32>
    %85 = arith.addf %83, %84 : vector<32x32xf32>
    %86 = math.tanh %85 : vector<32x32xf32>
    %87 = arith.mulf %82, %86 : vector<32x32xf32>
    %88 = vector.extract_strided_slice %0 {offsets = [0, 3], sizes = [32, 1], strides = [1, 1]} : vector<32x6xf32> to vector<32x1xf32>
    %89 = vector.broadcast %88 : vector<32x1xf32> to vector<32x128xf32>
    %90 = arith.mulf %89, %4 : vector<32x128xf32>
    %91 = arith.addf %90, %7 : vector<32x128xf32>
    %92 = arith.truncf %87 : vector<32x32xf32> to vector<32x32xbf16>
    %cst_18 = arith.constant dense<0.000000e+00> : vector<32x128xf32>
    %93 = tpu.matmul %92, %10, %cst_18 {dimension_numbers = #tpu.dot_dimension_numbers<[1], [0], [0], [1], [0, 0, 1, 1], [], []>} : vector<32x32xbf16>, vector<32x128xbf16>, vector<32x128xf32> -> vector<32x128xf32>
    %94 = arith.addf %91, %93 : vector<32x128xf32>
    %95 = arith.negf %94 : vector<32x128xf32>
    %96 = math.exp %95 : vector<32x128xf32>
    %cst_19 = arith.constant 1.000000e+00 : f32
    %97 = vector.broadcast %cst_19 : f32 to vector<32x128xf32>
    %98 = arith.addf %97, %96 : vector<32x128xf32>
    %99 = arith.divf %97, %98 : vector<32x128xf32>
    %100 = vector.extract_strided_slice %99 {offsets = [0, 0], sizes = [32, 32], strides = [1, 1]} : vector<32x128xf32> to vector<32x32xf32>
    %101 = vector.extract_strided_slice %99 {offsets = [0, 32], sizes = [32, 32], strides = [1, 1]} : vector<32x128xf32> to vector<32x32xf32>
    %102 = vector.extract_strided_slice %99 {offsets = [0, 64], sizes = [32, 32], strides = [1, 1]} : vector<32x128xf32> to vector<32x32xf32>
    %cst_20 = arith.constant 2.000000e+00 : f32
    %103 = vector.broadcast %cst_20 : f32 to vector<32x32xf32>
    %104 = arith.mulf %103, %102 : vector<32x32xf32>
    %cst_21 = arith.constant 1.000000e+00 : f32
    %105 = vector.broadcast %cst_21 : f32 to vector<32x32xf32>
    %106 = arith.subf %104, %105 : vector<32x32xf32>
    %107 = vector.extract_strided_slice %99 {offsets = [0, 96], sizes = [32, 32], strides = [1, 1]} : vector<32x128xf32> to vector<32x32xf32>
    %108 = arith.mulf %101, %85 : vector<32x32xf32>
    %109 = arith.mulf %100, %106 : vector<32x32xf32>
    %110 = arith.addf %108, %109 : vector<32x32xf32>
    %111 = math.tanh %110 : vector<32x32xf32>
    %112 = arith.mulf %107, %111 : vector<32x32xf32>
    %113 = vector.extract_strided_slice %0 {offsets = [0, 4], sizes = [32, 1], strides = [1, 1]} : vector<32x6xf32> to vector<32x1xf32>
    %114 = vector.broadcast %113 : vector<32x1xf32> to vector<32x128xf32>
    %115 = arith.mulf %114, %4 : vector<32x128xf32>
    %116 = arith.addf %115, %7 : vector<32x128xf32>
    %117 = arith.truncf %112 : vector<32x32xf32> to vector<32x32xbf16>
    %cst_22 = arith.constant dense<0.000000e+00> : vector<32x128xf32>
    %118 = tpu.matmul %117, %10, %cst_22 {dimension_numbers = #tpu.dot_dimension_numbers<[1], [0], [0], [1], [0, 0, 1, 1], [], []>} : vector<32x32xbf16>, vector<32x128xbf16>, vector<32x128xf32> -> vector<32x128xf32>
    %119 = arith.addf %116, %118 : vector<32x128xf32>
    %120 = arith.negf %119 : vector<32x128xf32>
    %121 = math.exp %120 : vector<32x128xf32>
    %cst_23 = arith.constant 1.000000e+00 : f32
    %122 = vector.broadcast %cst_23 : f32 to vector<32x128xf32>
    %123 = arith.addf %122, %121 : vector<32x128xf32>
    %124 = arith.divf %122, %123 : vector<32x128xf32>
    %125 = vector.extract_strided_slice %124 {offsets = [0, 0], sizes = [32, 32], strides = [1, 1]} : vector<32x128xf32> to vector<32x32xf32>
    %126 = vector.extract_strided_slice %124 {offsets = [0, 32], sizes = [32, 32], strides = [1, 1]} : vector<32x128xf32> to vector<32x32xf32>
    %127 = vector.extract_strided_slice %124 {offsets = [0, 64], sizes = [32, 32], strides = [1, 1]} : vector<32x128xf32> to vector<32x32xf32>
    %cst_24 = arith.constant 2.000000e+00 : f32
    %128 = vector.broadcast %cst_24 : f32 to vector<32x32xf32>
    %129 = arith.mulf %128, %127 : vector<32x32xf32>
    %cst_25 = arith.constant 1.000000e+00 : f32
    %130 = vector.broadcast %cst_25 : f32 to vector<32x32xf32>
    %131 = arith.subf %129, %130 : vector<32x32xf32>
    %132 = vector.extract_strided_slice %124 {offsets = [0, 96], sizes = [32, 32], strides = [1, 1]} : vector<32x128xf32> to vector<32x32xf32>
    %133 = arith.mulf %126, %110 : vector<32x32xf32>
    %134 = arith.mulf %125, %131 : vector<32x32xf32>
    %135 = arith.addf %133, %134 : vector<32x32xf32>
    %136 = math.tanh %135 : vector<32x32xf32>
    %137 = arith.mulf %132, %136 : vector<32x32xf32>
    %138 = vector.extract_strided_slice %0 {offsets = [0, 5], sizes = [32, 1], strides = [1, 1]} : vector<32x6xf32> to vector<32x1xf32>
    %139 = vector.broadcast %138 : vector<32x1xf32> to vector<32x128xf32>
    %140 = arith.mulf %139, %4 : vector<32x128xf32>
    %141 = arith.addf %140, %7 : vector<32x128xf32>
    %142 = arith.truncf %137 : vector<32x32xf32> to vector<32x32xbf16>
    %cst_26 = arith.constant dense<0.000000e+00> : vector<32x128xf32>
    %143 = tpu.matmul %142, %10, %cst_26 {dimension_numbers = #tpu.dot_dimension_numbers<[1], [0], [0], [1], [0, 0, 1, 1], [], []>} : vector<32x32xbf16>, vector<32x128xbf16>, vector<32x128xf32> -> vector<32x128xf32>
    %144 = arith.addf %141, %143 : vector<32x128xf32>
    %145 = arith.negf %144 : vector<32x128xf32>
    %146 = math.exp %145 : vector<32x128xf32>
    %cst_27 = arith.constant 1.000000e+00 : f32
    %147 = vector.broadcast %cst_27 : f32 to vector<32x128xf32>
    %148 = arith.addf %147, %146 : vector<32x128xf32>
    %149 = arith.divf %147, %148 : vector<32x128xf32>
    %150 = vector.extract_strided_slice %149 {offsets = [0, 0], sizes = [32, 32], strides = [1, 1]} : vector<32x128xf32> to vector<32x32xf32>
    %151 = vector.extract_strided_slice %149 {offsets = [0, 32], sizes = [32, 32], strides = [1, 1]} : vector<32x128xf32> to vector<32x32xf32>
    %152 = vector.extract_strided_slice %149 {offsets = [0, 64], sizes = [32, 32], strides = [1, 1]} : vector<32x128xf32> to vector<32x32xf32>
    %cst_28 = arith.constant 2.000000e+00 : f32
    %153 = vector.broadcast %cst_28 : f32 to vector<32x32xf32>
    %154 = arith.mulf %153, %152 : vector<32x32xf32>
    %cst_29 = arith.constant 1.000000e+00 : f32
    %155 = vector.broadcast %cst_29 : f32 to vector<32x32xf32>
    %156 = arith.subf %154, %155 : vector<32x32xf32>
    %157 = vector.extract_strided_slice %149 {offsets = [0, 96], sizes = [32, 32], strides = [1, 1]} : vector<32x128xf32> to vector<32x32xf32>
    %158 = arith.mulf %151, %135 : vector<32x32xf32>
    %159 = arith.mulf %150, %156 : vector<32x32xf32>
    %160 = arith.addf %158, %159 : vector<32x32xf32>
    %161 = math.tanh %160 : vector<32x32xf32>
    %162 = arith.mulf %157, %161 : vector<32x32xf32>
    %163 = vector.broadcast %8 : vector<1x32xf32> to vector<32x32xf32>
    %164 = arith.mulf %162, %163 : vector<32x32xf32>
    %cst_30 = arith.constant dense<0.000000e+00> : vector<32xf32>
    %165 = vector.multi_reduction <add>, %164, %cst_30 [1] : vector<32x32xf32> to vector<32xf32>
    %166 = vector.shape_cast %165 : vector<32xf32> to vector<32x1xf32>
    %167 = vector.broadcast %9 : vector<1x1xf32> to vector<32x1xf32>
    %168 = arith.addf %166, %167 : vector<32x1xf32>
    %c0_31 = arith.constant 0 : index
    %c0_32 = arith.constant 0 : index
    %169 = vector.load %arg3[%c0_31, %c0_32] : memref<32x1xf32, #tpu.memory_space<vmem>>, vector<32x1xf32>
    tpu.vector_store %arg3[%c0_31, %c0_32], %168 {strides = array<i32>} : memref<32x1xf32, #tpu.memory_space<vmem>>, vector<32x1xf32>,
    return
  }
}

</mosaic_0001>

<llo_original>
// kernel: lstm_model_forward.1
$region0: #{lstm_model_forward.1}
  #allocation0 [shape = 'u32[]', space=smem, size = 0x4, offset = 0x4, fixed_abs, tag = 'smem constant byte address 0x4 - core index']
  #allocation1 [shape = 'u32[144,128]{1,0:T(1,128)}', space=vmem, size = 0x12000, scoped, tag = 'internal scratch']
  %s0 = inlined_call_operand.vmem [shape: f32[32,6], index: 0, kind: input, shape index: {}]
  %s1 = inlined_call_operand.vmem [shape: f32[8,128], index: 1, kind: input, shape index: {}]
  %s2 = inlined_call_operand.vmem [shape: bf16[32,128], index: 2, kind: input, shape index: {}]
  %s3 = inlined_call_operand.vmem [shape: f32[32,1], index: 3, kind: output, shape index: {}]
  %s4 = sld [smem:[#allocation0]]
  $region22: #{lstm_model_forward.1} parent=0
    _
  %s6 = ssub.s32 1, %s4
  %s7 = scalar_select 0, %s6, %s4
  // Predicated region
  $region2: #{lstm_model_forward.1} parent=0 // pred_check
    _
  $region3: #{lstm_model_forward.1} parent=0 // pred_check_branch
    %9 = sbr.rel (0) target = $region5
  $region4: #{lstm_model_forward.1} parent=0 // pred_region
    _
  $region5: #{lstm_model_forward.1} parent=0 // pred_fallthru
    _
  // Predicated region
  $region6: #{lstm_model_forward.1} parent=0 // pred_check
    _
  $region7: #{lstm_model_forward.1} parent=0 // pred_check_branch
    %11 = sbr.rel (0) target = $region9
  $region8: #{lstm_model_forward.1} parent=0 // pred_region
    _
  $region9: #{lstm_model_forward.1} parent=0 // pred_fallthru
    _
  // Predicated region
  $region10: #{lstm_model_forward.1} parent=0 // pred_check
    _
  $region11: #{lstm_model_forward.1} parent=0 // pred_check_branch
    %13 = sbr.rel (0) target = $region13
  $region12: #{lstm_model_forward.1} parent=0 // pred_region
    _
  $region13: #{lstm_model_forward.1} parent=0 // pred_fallthru
    _
  %v15 = vld [vmem:[%s0] sm:$0xff]
  %v16 = vld [vmem:[%s0 + $0x8] sm:$0xff]
  %v17 = vld [vmem:[%s0 + $0x10] sm:$0xff]
  %v18 = vld [vmem:[%s0 + $0x18] sm:$0xff]
  %v19 = vld [vmem:[%s1] sm:$0xff]
  %v20 = vlaneseq
  %v21 = vshrl.u32 %v20, 7
  %v22 = vsub.s32 0, %v21
  %v23 = vrot.slane %v19, %v22
  %v24 = vlaneseq
  %v25 = vshrl.u32 %v24, 7
  %v26 = vsub.s32 1, %v25
  %v27 = vrot.slane %v19, %v26
  %v28 = vld [vmem:[%s2] sm:$0xf]
  %v29 = vld [vmem:[%s2 + $0x4] sm:$0xf]
  %v30 = vld [vmem:[%s2 + $0x8] sm:$0xf]
  %v31 = vld [vmem:[%s2 + $0xc] sm:$0xf]
  %33 = vset.pattern.permute.xlu0 0
  %34 = vperm.xlu0 %33, %v15
  %v35 = vpop.permute.xlu0 %34
  %38 = vset.pattern.permute.xlu0 0
  %39 = vperm.xlu0 %38, %v16
  %v40 = vpop.permute.xlu0 %39
  %43 = vset.pattern.permute.xlu0 0
  %44 = vperm.xlu0 %43, %v17
  %v45 = vpop.permute.xlu0 %44
  %48 = vset.pattern.permute.xlu0 0
  %49 = vperm.xlu0 %48, %v18
  %v50 = vpop.permute.xlu0 %49
  %v52 = vmul.f32 %v35, %v23
  %v53 = vmul.f32 %v40, %v23
  %v54 = vmul.f32 %v45, %v23
  %v55 = vmul.f32 %v50, %v23
  %v56 = vadd.f32 %v52, %v27
  %v57 = vadd.f32 %v53, %v27
  %v58 = vadd.f32 %v54, %v27
  %v59 = vadd.f32 %v55, %v27
  %v64 = vunpack.c.l.b16 %v28
  %v65 = vunpack.c.l.b16 %v29
  %v66 = vunpack.c.l.b16 %v30
  %v67 = vunpack.c.l.b16 %v31
  %v68 = vpack.c.b16 %v65, %v64
  %v69 = vpack.c.b16 %v67, %v66
  %vm72 = vcmask 261120
  %v74 = vsel %vm72, 0, 0
  %76 = vmatprep.subr.bf16.mxu0 0
  %77 = vmatpush1.bf16.msra.mxu0 %v68
  %78 = vmatprep.subr.bf16.mxu0 0
  %79 = vmatpush1.bf16.msra.mxu0 %v69
  %80 = vmatprep.subr.bf16.mxu0 0
  %81 = vmatpush1.bf16.msra.mxu0 0
  %82 = vmatprep.subr.bf16.mxu0 0
  %83 = vmatpush1.bf16.msra.mxu0 0
  %84 = vmatprep.subr.bf16.mxu0 0
  %85 = vmatpush1.bf16.msra.mxu0 0
  %86 = vmatprep.subr.bf16.mxu0 0
  %87 = vmatpush1.bf16.msra.mxu0 0
  %88 = vmatprep.subr.bf16.mxu0 0
  %89 = vmatpush1.bf16.msra.mxu0 0
  %90 = vmatprep.subr.bf16.mxu0 0
  %91 = vmatpush1.bf16.msra.mxu0 0
  %92 = vmatprep.subr.bf16.mxu0 0
  %93 = vmatpush1.bf16.msra.mxu0 0
  %94 = vmatprep.subr.bf16.mxu0 0
  %95 = vmatpush1.bf16.msra.mxu0 0
  %96 = vmatprep.subr.bf16.mxu0 0
  %97 = vmatpush1.bf16.msra.mxu0 0
  %98 = vmatprep.subr.bf16.mxu0 0
  %99 = vmatpush1.bf16.msra.mxu0 0
  %100 = vmatprep.subr.bf16.mxu0 0
  %101 = vmatpush1.bf16.msra.mxu0 0
  %102 = vmatprep.subr.bf16.mxu0 0
  %103 = vmatpush1.bf16.msra.mxu0 0
  %104 = vmatprep.subr.bf16.mxu0 0
  %105 = vmatpush1.bf16.msra.mxu0 0
  %106 = vmatprep.subr.bf16.mxu0 0
  %107 = vmatpush1.bf16.msra.mxu0 0
  %108 = vmatprep.mubr.bf16.mxu0 0
  %109 = vmatmul.mubr.bf16.gmra.mrb[0].mxu0 %v74
  %v110 = vpop.f32.mrb[0].mxu0
  %v111 = vadd.f32 0.0, %v110
  %v112 = vpop.f32.mrb[0].mxu0
  %v113 = vpop.f32.mrb[0].mxu0
  %v114 = vadd.f32 0.0, %v113
  %v115 = vpop.f32.mrb[0].mxu0
  %116 = vmatprep.mubr.bf16.mxu0 0
  %117 = vmatmul.mubr.bf16.gmra.mrb[0].mxu0 %v74
  %v118 = vpop.f32.mrb[0].mxu0
  %v119 = vadd.f32 0.0, %v118
  %v120 = vpop.f32.mrb[0].mxu0
  %v121 = vpop.f32.mrb[0].mxu0
  %v122 = vadd.f32 0.0, %v121
  %v123 = vpop.f32.mrb[0].mxu0
  %124 = vdwg.mxu0
  %v125 = vadd.f32 %v56, %v111
  %v126 = vadd.f32 %v57, %v114
  %v127 = vadd.f32 %v58, %v119
  %v128 = vadd.f32 %v59, %v122
  %v129 = vxor.u32 %v125, 2147483648
  %v130 = vxor.u32 %v126, 2147483648
  %v131 = vxor.u32 %v127, 2147483648
  %v132 = vxor.u32 %v128, 2147483648
  %v133 = vmul.f32 %v129, 1.442695
  %v134 = vpow.pop %v133
  %v135 = vmul.f32 %v130, 1.442695
  %v136 = vpow.pop %v135
  %v137 = vmul.f32 %v131, 1.442695
  %v138 = vpow.pop %v137
  %v139 = vmul.f32 %v132, 1.442695
  %v140 = vpow.pop %v139
  %v141 = vadd.f32 %v134, 1.0
  %v142 = vadd.f32 %v136, 1.0
  %v143 = vadd.f32 %v138, 1.0
  %v144 = vadd.f32 %v140, 1.0
  %v145 = vrcp.pop %v141
  %v146 = vmul.f32 1.0, %v145
  %v147 = vrcp.pop %v142
  %v148 = vmul.f32 1.0, %v147
  %v149 = vrcp.pop %v143
  %v150 = vmul.f32 1.0, %v149
  %v151 = vrcp.pop %v144
  %v152 = vmul.f32 1.0, %v151
  %v153 = vmul.f32 %v146, 2.0
  %v154 = vmul.f32 %v148, 2.0
  %v155 = vmul.f32 %v150, 2.0
  %v156 = vmul.f32 %v152, 2.0
  %v157 = vsub.f32 %v153, 1.0
  %v158 = vsub.f32 %v154, 1.0
  %v159 = vsub.f32 %v155, 1.0
  %v160 = vsub.f32 %v156, 1.0
  %v161 = vmul.f32 %v146, 0.0
  %v162 = vmul.f32 %v148, 0.0
  %v163 = vmul.f32 %v150, 0.0
  %v164 = vmul.f32 %v152, 0.0
  %169 = vrot.lane.b32.xlu0 %v157, 64
  %v170 = vpop.permute.xlu0 %169
  %171 = vrot.lane.b32.xlu0 %v158, 64
  %v172 = vpop.permute.xlu0 %171
  %173 = vrot.lane.b32.xlu0 %v159, 64
  %v174 = vpop.permute.xlu0 %173
  %175 = vrot.lane.b32.xlu0 %v160, 64
  %v176 = vpop.permute.xlu0 %175
  %v181 = vmul.f32 %v146, %v170
  %v182 = vmul.f32 %v148, %v172
  %v183 = vmul.f32 %v150, %v174
  %v184 = vmul.f32 %v152, %v176
  %189 = vrot.lane.b32.xlu0 %v181, 32
  %v190 = vpop.permute.xlu0 %189
  %191 = vrot.lane.b32.xlu0 %v182, 32
  %v192 = vpop.permute.xlu0 %191
  %193 = vrot.lane.b32.xlu0 %v183, 32
  %v194 = vpop.permute.xlu0 %193
  %195 = vrot.lane.b32.xlu0 %v184, 32
  %v196 = vpop.permute.xlu0 %195
  %v201 = vadd.f32 %v161, %v190
  %v202 = vadd.f32 %v162, %v192
  %v203 = vadd.f32 %v163, %v194
  %v204 = vadd.f32 %v164, %v196
  %v205 = vtanh.pop %v201
  %v206 = vtanh.pop %v202
  %v207 = vtanh.pop %v203
  %v208 = vtanh.pop %v204
  %213 = vrot.lane.b32.xlu0 %v205, 64
  %v214 = vpop.permute.xlu0 %213
  %215 = vrot.lane.b32.xlu0 %v206, 64
  %v216 = vpop.permute.xlu0 %215
  %217 = vrot.lane.b32.xlu0 %v207, 64
  %v218 = vpop.permute.xlu0 %217
  %219 = vrot.lane.b32.xlu0 %v208, 64
  %v220 = vpop.permute.xlu0 %219
  %v225 = vmul.f32 %v146, %v214
  %v226 = vmul.f32 %v148, %v216
  %v227 = vmul.f32 %v150, %v218
  %v228 = vmul.f32 %v152, %v220
  %229 = vset.pattern.permute.xlu0 1
  %230 = vperm.xlu0 %229, %v15
  %v231 = vpop.permute.xlu0 %230
  %233 = vset.pattern.permute.xlu0 1
  %234 = vperm.xlu0 %233, %v16
  %v235 = vpop.permute.xlu0 %234
  %237 = vset.pattern.permute.xlu0 1
  %238 = vperm.xlu0 %237, %v17
  %v239 = vpop.permute.xlu0 %238
  %241 = vset.pattern.permute.xlu0 1
  %242 = vperm.xlu0 %241, %v18
  %v243 = vpop.permute.xlu0 %242
  %v245 = vmul.f32 %v231, %v23
  %v246 = vmul.f32 %v235, %v23
  %v247 = vmul.f32 %v239, %v23
  %v248 = vmul.f32 %v243, %v23
  %v249 = vadd.f32 %v245, %v27
  %v250 = vadd.f32 %v246, %v27
  %v251 = vadd.f32 %v247, %v27
  %v252 = vadd.f32 %v248, %v27
  %v253 = vpack.c.bf16 %v226, %v225
  %v254 = vpack.c.bf16 %v228, %v227
  %257 = vrot.lane.b32.xlu0 %v253, 32
  %v258 = vpop.permute.xlu0 %257
  %259 = vrot.lane.b32.xlu0 %v254, 32
  %v260 = vpop.permute.xlu0 %259
  %v262 = vsel %vm72, %v258, 0
  %v265 = vsel %vm72, %v260, 0
  %267 = vmatprep.subr.bf16.mxu0 0
  %268 = vmatpush1.bf16.msra.mxu0 %v68
  %269 = vmatprep.subr.bf16.mxu0 0
  %270 = vmatpush1.bf16.msra.mxu0 %v69
  %271 = vmatprep.subr.bf16.mxu0 0
  %272 = vmatpush1.bf16.msra.mxu0 0
  %273 = vmatprep.subr.bf16.mxu0 0
  %274 = vmatpush1.bf16.msra.mxu0 0
  %275 = vmatprep.subr.bf16.mxu0 0
  %276 = vmatpush1.bf16.msra.mxu0 0
  %277 = vmatprep.subr.bf16.mxu0 0
  %278 = vmatpush1.bf16.msra.mxu0 0
  %279 = vmatprep.subr.bf16.mxu0 0
  %280 = vmatpush1.bf16.msra.mxu0 0
  %281 = vmatprep.subr.bf16.mxu0 0
  %282 = vmatpush1.bf16.msra.mxu0 0
  %283 = vmatprep.subr.bf16.mxu0 0
  %284 = vmatpush1.bf16.msra.mxu0 0
  %285 = vmatprep.subr.bf16.mxu0 0
  %286 = vmatpush1.bf16.msra.mxu0 0
  %287 = vmatprep.subr.bf16.mxu0 0
  %288 = vmatpush1.bf16.msra.mxu0 0
  %289 = vmatprep.subr.bf16.mxu0 0
  %290 = vmatpush1.bf16.msra.mxu0 0
  %291 = vmatprep.subr.bf16.mxu0 0
  %292 = vmatpush1.bf16.msra.mxu0 0
  %293 = vmatprep.subr.bf16.mxu0 0
  %294 = vmatpush1.bf16.msra.mxu0 0
  %295 = vmatprep.subr.bf16.mxu0 0
  %296 = vmatpush1.bf16.msra.mxu0 0
  %297 = vmatprep.subr.bf16.mxu0 0
  %298 = vmatpush1.bf16.msra.mxu0 0
  %299 = vmatprep.mubr.bf16.mxu0 0
  %300 = vmatmul.mubr.bf16.gmra.mrb[0].mxu0 %v262
  %v301 = vpop.f32.mrb[0].mxu0
  %v302 = vadd.f32 0.0, %v301
  %v303 = vpop.f32.mrb[0].mxu0
  %v304 = vpop.f32.mrb[0].mxu0
  %v305 = vadd.f32 0.0, %v304
  %v306 = vpop.f32.mrb[0].mxu0
  %307 = vmatprep.mubr.bf16.mxu0 0
  %308 = vmatmul.mubr.bf16.gmra.mrb[0].mxu0 %v265
  %v309 = vpop.f32.mrb[0].mxu0
  %v310 = vadd.f32 0.0, %v309
  %v311 = vpop.f32.mrb[0].mxu0
  %v312 = vpop.f32.mrb[0].mxu0
  %v313 = vadd.f32 0.0, %v312
  %v314 = vpop.f32.mrb[0].mxu0
  %315 = vdwg.mxu0
  %v316 = vadd.f32 %v249, %v302
  %v317 = vadd.f32 %v250, %v305
  %v318 = vadd.f32 %v251, %v310
  %v319 = vadd.f32 %v252, %v313
  %v320 = vxor.u32 %v316, 2147483648
  %v321 = vxor.u32 %v317, 2147483648
  %v322 = vxor.u32 %v318, 2147483648
  %v323 = vxor.u32 %v319, 2147483648
  %v324 = vmul.f32 %v320, 1.442695
  %v325 = vpow.pop %v324
  %v326 = vmul.f32 %v321, 1.442695
  %v327 = vpow.pop %v326
  %v328 = vmul.f32 %v322, 1.442695
  %v329 = vpow.pop %v328
  %v330 = vmul.f32 %v323, 1.442695
  %v331 = vpow.pop %v330
  %v332 = vadd.f32 %v325, 1.0
  %v333 = vadd.f32 %v327, 1.0
  %v334 = vadd.f32 %v329, 1.0
  %v335 = vadd.f32 %v331, 1.0
  %v336 = vrcp.pop %v332
  %v337 = vmul.f32 1.0, %v336
  %v338 = vrcp.pop %v333
  %v339 = vmul.f32 1.0, %v338
  %v340 = vrcp.pop %v334
  %v341 = vmul.f32 1.0, %v340
  %v342 = vrcp.pop %v335
  %v343 = vmul.f32 1.0, %v342
  %v344 = vmul.f32 %v337, 2.0
  %v345 = vmul.f32 %v339, 2.0
  %v346 = vmul.f32 %v341, 2.0
  %v347 = vmul.f32 %v343, 2.0
  %v348 = vsub.f32 %v344, 1.0
  %v349 = vsub.f32 %v345, 1.0
  %v350 = vsub.f32 %v346, 1.0
  %v351 = vsub.f32 %v347, 1.0
  %v352 = vmul.f32 %v337, %v201
  %v353 = vmul.f32 %v339, %v202
  %v354 = vmul.f32 %v341, %v203
  %v355 = vmul.f32 %v343, %v204
  %360 = vrot.lane.b32.xlu0 %v348, 64
  %v361 = vpop.permute.xlu0 %360
  %362 = vrot.lane.b32.xlu0 %v349, 64
  %v363 = vpop.permute.xlu0 %362
  %364 = vrot.lane.b32.xlu0 %v350, 64
  %v365 = vpop.permute.xlu0 %364
  %366 = vrot.lane.b32.xlu0 %v351, 64
  %v367 = vpop.permute.xlu0 %366
  %v372 = vmul.f32 %v337, %v361
  %v373 = vmul.f32 %v339, %v363
  %v374 = vmul.f32 %v341, %v365
  %v375 = vmul.f32 %v343, %v367
  %380 = vrot.lane.b32.xlu0 %v372, 32
  %v381 = vpop.permute.xlu0 %380
  %382 = vrot.lane.b32.xlu0 %v373, 32
  %v383 = vpop.permute.xlu0 %382
  %384 = vrot.lane.b32.xlu0 %v374, 32
  %v385 = vpop.permute.xlu0 %384
  %386 = vrot.lane.b32.xlu0 %v375, 32
  %v387 = vpop.permute.xlu0 %386
  %v392 = vadd.f32 %v352, %v381
  %v393 = vadd.f32 %v353, %v383
  %v394 = vadd.f32 %v354, %v385
  %v395 = vadd.f32 %v355, %v387
  %v396 = vtanh.pop %v392
  %v397 = vtanh.pop %v393
  %v398 = vtanh.pop %v394
  %v399 = vtanh.pop %v395
  %404 = vrot.lane.b32.xlu0 %v396, 64
  %v405 = vpop.permute.xlu0 %404
  %406 = vrot.lane.b32.xlu0 %v397, 64
  %v407 = vpop.permute.xlu0 %406
  %408 = vrot.lane.b32.xlu0 %v398, 64
  %v409 = vpop.permute.xlu0 %408
  %410 = vrot.lane.b32.xlu0 %v399, 64
  %v411 = vpop.permute.xlu0 %410
  %v416 = vmul.f32 %v337, %v405
  %v417 = vmul.f32 %v339, %v407
  %v418 = vmul.f32 %v341, %v409
  %v419 = vmul.f32 %v343, %v411
  %420 = vset.pattern.permute.xlu0 2
  %421 = vperm.xlu0 %420, %v15
  %v422 = vpop.permute.xlu0 %421
  %424 = vset.pattern.permute.xlu0 2
  %425 = vperm.xlu0 %424, %v16
  %v426 = vpop.permute.xlu0 %425
  %428 = vset.pattern.permute.xlu0 2
  %429 = vperm.xlu0 %428, %v17
  %v430 = vpop.permute.xlu0 %429
  %432 = vset.pattern.permute.xlu0 2
  %433 = vperm.xlu0 %432, %v18
  %v434 = vpop.permute.xlu0 %433
  %v436 = vmul.f32 %v422, %v23
  %v437 = vmul.f32 %v426, %v23
  %v438 = vmul.f32 %v430, %v23
  %v439 = vmul.f32 %v434, %v23
  %v440 = vadd.f32 %v436, %v27
  %v441 = vadd.f32 %v437, %v27
  %v442 = vadd.f32 %v438, %v27
  %v443 = vadd.f32 %v439, %v27
  %v444 = vpack.c.bf16 %v417, %v416
  %v445 = vpack.c.bf16 %v419, %v418
  %448 = vrot.lane.b32.xlu0 %v444, 32
  %v449 = vpop.permute.xlu0 %448
  %450 = vrot.lane.b32.xlu0 %v445, 32
  %v451 = vpop.permute.xlu0 %450
  %v453 = vsel %vm72, %v449, 0
  %v456 = vsel %vm72, %v451, 0
  %458 = vmatprep.subr.bf16.mxu0 0
  %459 = vmatpush1.bf16.msra.mxu0 %v68
  %460 = vmatprep.subr.bf16.mxu0 0
  %461 = vmatpush1.bf16.msra.mxu0 %v69
  %462 = vmatprep.subr.bf16.mxu0 0
  %463 = vmatpush1.bf16.msra.mxu0 0
  %464 = vmatprep.subr.bf16.mxu0 0
  %465 = vmatpush1.bf16.msra.mxu0 0
  %466 = vmatprep.subr.bf16.mxu0 0
  %467 = vmatpush1.bf16.msra.mxu0 0
  %468 = vmatprep.subr.bf16.mxu0 0
  %469 = vmatpush1.bf16.msra.mxu0 0
  %470 = vmatprep.subr.bf16.mxu0 0
  %471 = vmatpush1.bf16.msra.mxu0 0
  %472 = vmatprep.subr.bf16.mxu0 0
  %473 = vmatpush1.bf16.msra.mxu0 0
  %474 = vmatprep.subr.bf16.mxu0 0
  %475 = vmatpush1.bf16.msra.mxu0 0
  %476 = vmatprep.subr.bf16.mxu0 0
  %477 = vmatpush1.bf16.msra.mxu0 0
  %478 = vmatprep.subr.bf16.mxu0 0
  %479 = vmatpush1.bf16.msra.mxu0 0
  %480 = vmatprep.subr.bf16.mxu0 0
  %481 = vmatpush1.bf16.msra.mxu0 0
  %482 = vmatprep.subr.bf16.mxu0 0
  %483 = vmatpush1.bf16.msra.mxu0 0
  %484 = vmatprep.subr.bf16.mxu0 0
  %485 = vmatpush1.bf16.msra.mxu0 0
  %486 = vmatprep.subr.bf16.mxu0 0
  %487 = vmatpush1.bf16.msra.mxu0 0
  %488 = vmatprep.subr.bf16.mxu0 0
  %489 = vmatpush1.bf16.msra.mxu0 0
  %490 = vmatprep.mubr.bf16.mxu0 0
  %491 = vmatmul.mubr.bf16.gmra.mrb[0].mxu0 %v453
  %v492 = vpop.f32.mrb[0].mxu0
  %v493 = vadd.f32 0.0, %v492
  %v494 = vpop.f32.mrb[0].mxu0
  %v495 = vpop.f32.mrb[0].mxu0
  %v496 = vadd.f32 0.0, %v495
  %v497 = vpop.f32.mrb[0].mxu0
  %498 = vmatprep.mubr.bf16.mxu0 0
  %499 = vmatmul.mubr.bf16.gmra.mrb[0].mxu0 %v456
  %v500 = vpop.f32.mrb[0].mxu0
  %v501 = vadd.f32 0.0, %v500
  %v502 = vpop.f32.mrb[0].mxu0
  %v503 = vpop.f32.mrb[0].mxu0
  %v504 = vadd.f32 0.0, %v503
  %v505 = vpop.f32.mrb[0].mxu0
  %506 = vdwg.mxu0
  %v507 = vadd.f32 %v440, %v493
  %v508 = vadd.f32 %v441, %v496
  %v509 = vadd.f32 %v442, %v501
  %v510 = vadd.f32 %v443, %v504
  %v511 = vxor.u32 %v507, 2147483648
  %v512 = vxor.u32 %v508, 2147483648
  %v513 = vxor.u32 %v509, 2147483648
  %v514 = vxor.u32 %v510, 2147483648
  %v515 = vmul.f32 %v511, 1.442695
  %v516 = vpow.pop %v515
  %v517 = vmul.f32 %v512, 1.442695
  %v518 = vpow.pop %v517
  %v519 = vmul.f32 %v513, 1.442695
  %v520 = vpow.pop %v519
  %v521 = vmul.f32 %v514, 1.442695
  %v522 = vpow.pop %v521
  %v523 = vadd.f32 %v516, 1.0
  %v524 = vadd.f32 %v518, 1.0
  %v525 = vadd.f32 %v520, 1.0
  %v526 = vadd.f32 %v522, 1.0
  %v527 = vrcp.pop %v523
  %v528 = vmul.f32 1.0, %v527
  %v529 = vrcp.pop %v524
  %v530 = vmul.f32 1.0, %v529
  %v531 = vrcp.pop %v525
  %v532 = vmul.f32 1.0, %v531
  %v533 = vrcp.pop %v526
  %v534 = vmul.f32 1.0, %v533
  %v535 = vmul.f32 %v528, 2.0
  %v536 = vmul.f32 %v530, 2.0
  %v537 = vmul.f32 %v532, 2.0
  %v538 = vmul.f32 %v534, 2.0
  %v539 = vsub.f32 %v535, 1.0
  %v540 = vsub.f32 %v536, 1.0
  %v541 = vsub.f32 %v537, 1.0
  %v542 = vsub.f32 %v538, 1.0
  %v543 = vmul.f32 %v528, %v392
  %v544 = vmul.f32 %v530, %v393
  %v545 = vmul.f32 %v532, %v394
  %v546 = vmul.f32 %v534, %v395
  %551 = vrot.lane.b32.xlu0 %v539, 64
  %v552 = vpop.permute.xlu0 %551
  %553 = vrot.lane.b32.xlu0 %v540, 64
  %v554 = vpop.permute.xlu0 %553
  %555 = vrot.lane.b32.xlu0 %v541, 64
  %v556 = vpop.permute.xlu0 %555
  %557 = vrot.lane.b32.xlu0 %v542, 64
  %v558 = vpop.permute.xlu0 %557
  %v563 = vmul.f32 %v528, %v552
  %v564 = vmul.f32 %v530, %v554
  %v565 = vmul.f32 %v532, %v556
  %v566 = vmul.f32 %v534, %v558
  %571 = vrot.lane.b32.xlu0 %v563, 32
  %v572 = vpop.permute.xlu0 %571
  %573 = vrot.lane.b32.xlu0 %v564, 32
  %v574 = vpop.permute.xlu0 %573
  %575 = vrot.lane.b32.xlu0 %v565, 32
  %v576 = vpop.permute.xlu0 %575
  %577 = vrot.lane.b32.xlu0 %v566, 32
  %v578 = vpop.permute.xlu0 %577
  %v583 = vadd.f32 %v543, %v572
  %v584 = vadd.f32 %v544, %v574
  %v585 = vadd.f32 %v545, %v576
  %v586 = vadd.f32 %v546, %v578
  %v587 = vtanh.pop %v583
  %v588 = vtanh.pop %v584
  %v589 = vtanh.pop %v585
  %v590 = vtanh.pop %v586
  %595 = vrot.lane.b32.xlu0 %v587, 64
  %v596 = vpop.permute.xlu0 %595
  %597 = vrot.lane.b32.xlu0 %v588, 64
  %v598 = vpop.permute.xlu0 %597
  %599 = vrot.lane.b32.xlu0 %v589, 64
  %v600 = vpop.permute.xlu0 %599
  %601 = vrot.lane.b32.xlu0 %v590, 64
  %v602 = vpop.permute.xlu0 %601
  %v607 = vmul.f32 %v528, %v596
  %v608 = vmul.f32 %v530, %v598
  %v609 = vmul.f32 %v532, %v600
  %v610 = vmul.f32 %v534, %v602
  %611 = vset.pattern.permute.xlu0 3
  %612 = vperm.xlu0 %611, %v15
  %v613 = vpop.permute.xlu0 %612
  %615 = vset.pattern.permute.xlu0 3
  %616 = vperm.xlu0 %615, %v16
  %v617 = vpop.permute.xlu0 %616
  %619 = vset.pattern.permute.xlu0 3
  %620 = vperm.xlu0 %619, %v17
  %v621 = vpop.permute.xlu0 %620
  %623 = vset.pattern.permute.xlu0 3
  %624 = vperm.xlu0 %623, %v18
  %v625 = vpop.permute.xlu0 %624
  %v627 = vmul.f32 %v613, %v23
  %v628 = vmul.f32 %v617, %v23
  %v629 = vmul.f32 %v621, %v23
  %v630 = vmul.f32 %v625, %v23
  %v631 = vadd.f32 %v627, %v27
  %v632 = vadd.f32 %v628, %v27
  %v633 = vadd.f32 %v629, %v27
  %v634 = vadd.f32 %v630, %v27
  %v635 = vpack.c.bf16 %v608, %v607
  %v636 = vpack.c.bf16 %v610, %v609
  %639 = vrot.lane.b32.xlu0 %v635, 32
  %v640 = vpop.permute.xlu0 %639
  %641 = vrot.lane.b32.xlu0 %v636, 32
  %v642 = vpop.permute.xlu0 %641
  %v644 = vsel %vm72, %v640, 0
  %v647 = vsel %vm72, %v642, 0
  %649 = vmatprep.subr.bf16.mxu0 0
  %650 = vmatpush1.bf16.msra.mxu0 %v68
  %651 = vmatprep.subr.bf16.mxu0 0
  %652 = vmatpush1.bf16.msra.mxu0 %v69
  %653 = vmatprep.subr.bf16.mxu0 0
  %654 = vmatpush1.bf16.msra.mxu0 0
  %655 = vmatprep.subr.bf16.mxu0 0
  %656 = vmatpush1.bf16.msra.mxu0 0
  %657 = vmatprep.subr.bf16.mxu0 0
  %658 = vmatpush1.bf16.msra.mxu0 0
  %659 = vmatprep.subr.bf16.mxu0 0
  %660 = vmatpush1.bf16.msra.mxu0 0
  %661 = vmatprep.subr.bf16.mxu0 0
  %662 = vmatpush1.bf16.msra.mxu0 0
  %663 = vmatprep.subr.bf16.mxu0 0
  %664 = vmatpush1.bf16.msra.mxu0 0
  %665 = vmatprep.subr.bf16.mxu0 0
  %666 = vmatpush1.bf16.msra.mxu0 0
  %667 = vmatprep.subr.bf16.mxu0 0
  %668 = vmatpush1.bf16.msra.mxu0 0
  %669 = vmatprep.subr.bf16.mxu0 0
  %670 = vmatpush1.bf16.msra.mxu0 0
  %671 = vmatprep.subr.bf16.mxu0 0
  %672 = vmatpush1.bf16.msra.mxu0 0
  %673 = vmatprep.subr.bf16.mxu0 0
  %674 = vmatpush1.bf16.msra.mxu0 0
  %675 = vmatprep.subr.bf16.mxu0 0
  %676 = vmatpush1.bf16.msra.mxu0 0
  %677 = vmatprep.subr.bf16.mxu0 0
  %678 = vmatpush1.bf16.msra.mxu0 0
  %679 = vmatprep.subr.bf16.mxu0 0
  %680 = vmatpush1.bf16.msra.mxu0 0
  %681 = vmatprep.mubr.bf16.mxu0 0
  %682 = vmatmul.mubr.bf16.gmra.mrb[0].mxu0 %v644
  %v683 = vpop.f32.mrb[0].mxu0
  %v684 = vadd.f32 0.0, %v683
  %v685 = vpop.f32.mrb[0].mxu0
  %v686 = vpop.f32.mrb[0].mxu0
  %v687 = vadd.f32 0.0, %v686
  %v688 = vpop.f32.mrb[0].mxu0
  %689 = vmatprep.mubr.bf16.mxu0 0
  %690 = vmatmul.mubr.bf16.gmra.mrb[0].mxu0 %v647
  %v691 = vpop.f32.mrb[0].mxu0
  %v692 = vadd.f32 0.0, %v691
  %v693 = vpop.f32.mrb[0].mxu0
  %v694 = vpop.f32.mrb[0].mxu0
  %v695 = vadd.f32 0.0, %v694
  %v696 = vpop.f32.mrb[0].mxu0
  %697 = vdwg.mxu0
  %v698 = vadd.f32 %v631, %v684
  %v699 = vadd.f32 %v632, %v687
  %v700 = vadd.f32 %v633, %v692
  %v701 = vadd.f32 %v634, %v695
  %v702 = vxor.u32 %v698, 2147483648
  %v703 = vxor.u32 %v699, 2147483648
  %v704 = vxor.u32 %v700, 2147483648
  %v705 = vxor.u32 %v701, 2147483648
  %v706 = vmul.f32 %v702, 1.442695
  %v707 = vpow.pop %v706
  %v708 = vmul.f32 %v703, 1.442695
  %v709 = vpow.pop %v708
  %v710 = vmul.f32 %v704, 1.442695
  %v711 = vpow.pop %v710
  %v712 = vmul.f32 %v705, 1.442695
  %v713 = vpow.pop %v712
  %v714 = vadd.f32 %v707, 1.0
  %v715 = vadd.f32 %v709, 1.0
  %v716 = vadd.f32 %v711, 1.0
  %v717 = vadd.f32 %v713, 1.0
  %v718 = vrcp.pop %v714
  %v719 = vmul.f32 1.0, %v718
  %v720 = vrcp.pop %v715
  %v721 = vmul.f32 1.0, %v720
  %v722 = vrcp.pop %v716
  %v723 = vmul.f32 1.0, %v722
  %v724 = vrcp.pop %v717
  %v725 = vmul.f32 1.0, %v724
  %v726 = vmul.f32 %v719, 2.0
  %v727 = vmul.f32 %v721, 2.0
  %v728 = vmul.f32 %v723, 2.0
  %v729 = vmul.f32 %v725, 2.0
  %v730 = vsub.f32 %v726, 1.0
  %v731 = vsub.f32 %v727, 1.0
  %v732 = vsub.f32 %v728, 1.0
  %v733 = vsub.f32 %v729, 1.0
  %v734 = vmul.f32 %v719, %v583
  %v735 = vmul.f32 %v721, %v584
  %v736 = vmul.f32 %v723, %v585
  %v737 = vmul.f32 %v725, %v586
  %742 = vrot.lane.b32.xlu0 %v730, 64
  %v743 = vpop.permute.xlu0 %742
  %744 = vrot.lane.b32.xlu0 %v731, 64
  %v745 = vpop.permute.xlu0 %744
  %746 = vrot.lane.b32.xlu0 %v732, 64
  %v747 = vpop.permute.xlu0 %746
  %748 = vrot.lane.b32.xlu0 %v733, 64
  %v749 = vpop.permute.xlu0 %748
  %v754 = vmul.f32 %v719, %v743
  %v755 = vmul.f32 %v721, %v745
  %v756 = vmul.f32 %v723, %v747
  %v757 = vmul.f32 %v725, %v749
  %762 = vrot.lane.b32.xlu0 %v754, 32
  %v763 = vpop.permute.xlu0 %762
  %764 = vrot.lane.b32.xlu0 %v755, 32
  %v765 = vpop.permute.xlu0 %764
  %766 = vrot.lane.b32.xlu0 %v756, 32
  %v767 = vpop.permute.xlu0 %766
  %768 = vrot.lane.b32.xlu0 %v757, 32
  %v769 = vpop.permute.xlu0 %768
  %v774 = vadd.f32 %v734, %v763
  %v775 = vadd.f32 %v735, %v765
  %v776 = vadd.f32 %v736, %v767
  %v777 = vadd.f32 %v737, %v769
  %v778 = vtanh.pop %v774
  %v779 = vtanh.pop %v775
  %v780 = vtanh.pop %v776
  %v781 = vtanh.pop %v777
  %786 = vrot.lane.b32.xlu0 %v778, 64
  %v787 = vpop.permute.xlu0 %786
  %788 = vrot.lane.b32.xlu0 %v779, 64
  %v789 = vpop.permute.xlu0 %788
  %790 = vrot.lane.b32.xlu0 %v780, 64
  %v791 = vpop.permute.xlu0 %790
  %792 = vrot.lane.b32.xlu0 %v781, 64
  %v793 = vpop.permute.xlu0 %792
  %v798 = vmul.f32 %v719, %v787
  %v799 = vmul.f32 %v721, %v789
  %v800 = vmul.f32 %v723, %v791
  %v801 = vmul.f32 %v725, %v793
  %802 = vset.pattern.permute.xlu0 4
  %803 = vperm.xlu0 %802, %v15
  %v804 = vpop.permute.xlu0 %803
  %806 = vset.pattern.permute.xlu0 4
  %807 = vperm.xlu0 %806, %v16
  %v808 = vpop.permute.xlu0 %807
  %810 = vset.pattern.permute.xlu0 4
  %811 = vperm.xlu0 %810, %v17
  %v812 = vpop.permute.xlu0 %811
  %814 = vset.pattern.permute.xlu0 4
  %815 = vperm.xlu0 %814, %v18
  %v816 = vpop.permute.xlu0 %815
  %v818 = vmul.f32 %v804, %v23
  %v819 = vmul.f32 %v808, %v23
  %v820 = vmul.f32 %v812, %v23
  %v821 = vmul.f32 %v816, %v23
  %v822 = vadd.f32 %v818, %v27
  %v823 = vadd.f32 %v819, %v27
  %v824 = vadd.f32 %v820, %v27
  %v825 = vadd.f32 %v821, %v27
  %v826 = vpack.c.bf16 %v799, %v798
  %v827 = vpack.c.bf16 %v801, %v800
  %830 = vrot.lane.b32.xlu0 %v826, 32
  %v831 = vpop.permute.xlu0 %830
  %832 = vrot.lane.b32.xlu0 %v827, 32
  %v833 = vpop.permute.xlu0 %832
  %v835 = vsel %vm72, %v831, 0
  %v838 = vsel %vm72, %v833, 0
  %840 = vmatprep.subr.bf16.mxu0 0
  %841 = vmatpush1.bf16.msra.mxu0 %v68
  %842 = vmatprep.subr.bf16.mxu0 0
  %843 = vmatpush1.bf16.msra.mxu0 %v69
  %844 = vmatprep.subr.bf16.mxu0 0
  %845 = vmatpush1.bf16.msra.mxu0 0
  %846 = vmatprep.subr.bf16.mxu0 0
  %847 = vmatpush1.bf16.msra.mxu0 0
  %848 = vmatprep.subr.bf16.mxu0 0
  %849 = vmatpush1.bf16.msra.mxu0 0
  %850 = vmatprep.subr.bf16.mxu0 0
  %851 = vmatpush1.bf16.msra.mxu0 0
  %852 = vmatprep.subr.bf16.mxu0 0
  %853 = vmatpush1.bf16.msra.mxu0 0
  %854 = vmatprep.subr.bf16.mxu0 0
  %855 = vmatpush1.bf16.msra.mxu0 0
  %856 = vmatprep.subr.bf16.mxu0 0
  %857 = vmatpush1.bf16.msra.mxu0 0
  %858 = vmatprep.subr.bf16.mxu0 0
  %859 = vmatpush1.bf16.msra.mxu0 0
  %860 = vmatprep.subr.bf16.mxu0 0
  %861 = vmatpush1.bf16.msra.mxu0 0
  %862 = vmatprep.subr.bf16.mxu0 0
  %863 = vmatpush1.bf16.msra.mxu0 0
  %864 = vmatprep.subr.bf16.mxu0 0
  %865 = vmatpush1.bf16.msra.mxu0 0
  %866 = vmatprep.subr.bf16.mxu0 0
  %867 = vmatpush1.bf16.msra.mxu0 0
  %868 = vmatprep.subr.bf16.mxu0 0
  %869 = vmatpush1.bf16.msra.mxu0 0
  %870 = vmatprep.subr.bf16.mxu0 0
  %871 = vmatpush1.bf16.msra.mxu0 0
  %872 = vmatprep.mubr.bf16.mxu0 0
  %873 = vmatmul.mubr.bf16.gmra.mrb[0].mxu0 %v835
  %v874 = vpop.f32.mrb[0].mxu0
  %v875 = vadd.f32 0.0, %v874
  %v876 = vpop.f32.mrb[0].mxu0
  %v877 = vpop.f32.mrb[0].mxu0
  %v878 = vadd.f32 0.0, %v877
  %v879 = vpop.f32.mrb[0].mxu0
  %880 = vmatprep.mubr.bf16.mxu0 0
  %881 = vmatmul.mubr.bf16.gmra.mrb[0].mxu0 %v838
  %v882 = vpop.f32.mrb[0].mxu0
  %v883 = vadd.f32 0.0, %v882
  %v884 = vpop.f32.mrb[0].mxu0
  %v885 = vpop.f32.mrb[0].mxu0
  %v886 = vadd.f32 0.0, %v885
  %v887 = vpop.f32.mrb[0].mxu0
  %888 = vdwg.mxu0
  %v889 = vadd.f32 %v822, %v875
  %v890 = vadd.f32 %v823, %v878
  %v891 = vadd.f32 %v824, %v883
  %v892 = vadd.f32 %v825, %v886
  %v893 = vxor.u32 %v889, 2147483648
  %v894 = vxor.u32 %v890, 2147483648
  %v895 = vxor.u32 %v891, 2147483648
  %v896 = vxor.u32 %v892, 2147483648
  %v897 = vmul.f32 %v893, 1.442695
  %v898 = vpow.pop %v897
  %v899 = vmul.f32 %v894, 1.442695
  %v900 = vpow.pop %v899
  %v901 = vmul.f32 %v895, 1.442695
  %v902 = vpow.pop %v901
  %v903 = vmul.f32 %v896, 1.442695
  %v904 = vpow.pop %v903
  %v905 = vadd.f32 %v898, 1.0
  %v906 = vadd.f32 %v900, 1.0
  %v907 = vadd.f32 %v902, 1.0
  %v908 = vadd.f32 %v904, 1.0
  %v909 = vrcp.pop %v905
  %v910 = vmul.f32 1.0, %v909
  %v911 = vrcp.pop %v906
  %v912 = vmul.f32 1.0, %v911
  %v913 = vrcp.pop %v907
  %v914 = vmul.f32 1.0, %v913
  %v915 = vrcp.pop %v908
  %v916 = vmul.f32 1.0, %v915
  %v917 = vmul.f32 %v910, 2.0
  %v918 = vmul.f32 %v912, 2.0
  %v919 = vmul.f32 %v914, 2.0
  %v920 = vmul.f32 %v916, 2.0
  %v921 = vsub.f32 %v917, 1.0
  %v922 = vsub.f32 %v918, 1.0
  %v923 = vsub.f32 %v919, 1.0
  %v924 = vsub.f32 %v920, 1.0
  %v925 = vmul.f32 %v910, %v774
  %v926 = vmul.f32 %v912, %v775
  %v927 = vmul.f32 %v914, %v776
  %v928 = vmul.f32 %v916, %v777
  %933 = vrot.lane.b32.xlu0 %v921, 64
  %v934 = vpop.permute.xlu0 %933
  %935 = vrot.lane.b32.xlu0 %v922, 64
  %v936 = vpop.permute.xlu0 %935
  %937 = vrot.lane.b32.xlu0 %v923, 64
  %v938 = vpop.permute.xlu0 %937
  %939 = vrot.lane.b32.xlu0 %v924, 64
  %v940 = vpop.permute.xlu0 %939
  %v945 = vmul.f32 %v910, %v934
  %v946 = vmul.f32 %v912, %v936
  %v947 = vmul.f32 %v914, %v938
  %v948 = vmul.f32 %v916, %v940
  %953 = vrot.lane.b32.xlu0 %v945, 32
  %v954 = vpop.permute.xlu0 %953
  %955 = vrot.lane.b32.xlu0 %v946, 32
  %v956 = vpop.permute.xlu0 %955
  %957 = vrot.lane.b32.xlu0 %v947, 32
  %v958 = vpop.permute.xlu0 %957
  %959 = vrot.lane.b32.xlu0 %v948, 32
  %v960 = vpop.permute.xlu0 %959
  %v965 = vadd.f32 %v925, %v954
  %v966 = vadd.f32 %v926, %v956
  %v967 = vadd.f32 %v927, %v958
  %v968 = vadd.f32 %v928, %v960
  %v969 = vtanh.pop %v965
  %v970 = vtanh.pop %v966
  %v971 = vtanh.pop %v967
  %v972 = vtanh.pop %v968
  %977 = vrot.lane.b32.xlu0 %v969, 64
  %v978 = vpop.permute.xlu0 %977
  %979 = vrot.lane.b32.xlu0 %v970, 64
  %v980 = vpop.permute.xlu0 %979
  %981 = vrot.lane.b32.xlu0 %v971, 64
  %v982 = vpop.permute.xlu0 %981
  %983 = vrot.lane.b32.xlu0 %v972, 64
  %v984 = vpop.permute.xlu0 %983
  %v989 = vmul.f32 %v910, %v978
  %v990 = vmul.f32 %v912, %v980
  %v991 = vmul.f32 %v914, %v982
  %v992 = vmul.f32 %v916, %v984
  %993 = vset.pattern.permute.xlu0 5
  %994 = vperm.xlu0 %993, %v15
  %v995 = vpop.permute.xlu0 %994
  %997 = vset.pattern.permute.xlu0 5
  %998 = vperm.xlu0 %997, %v16
  %v999 = vpop.permute.xlu0 %998
  %1001 = vset.pattern.permute.xlu0 5
  %1002 = vperm.xlu0 %1001, %v17
  %v1003 = vpop.permute.xlu0 %1002
  %1005 = vset.pattern.permute.xlu0 5
  %1006 = vperm.xlu0 %1005, %v18
  %v1007 = vpop.permute.xlu0 %1006
  %v1009 = vmul.f32 %v995, %v23
  %v1010 = vmul.f32 %v999, %v23
  %v1011 = vmul.f32 %v1003, %v23
  %v1012 = vmul.f32 %v1007, %v23
  %v1013 = vadd.f32 %v1009, %v27
  %v1014 = vadd.f32 %v1010, %v27
  %v1015 = vadd.f32 %v1011, %v27
  %v1016 = vadd.f32 %v1012, %v27
  %v1017 = vpack.c.bf16 %v990, %v989
  %v1018 = vpack.c.bf16 %v992, %v991
  %1021 = vrot.lane.b32.xlu0 %v1017, 32
  %v1022 = vpop.permute.xlu0 %1021
  %1023 = vrot.lane.b32.xlu0 %v1018, 32
  %v1024 = vpop.permute.xlu0 %1023
  %v1026 = vsel %vm72, %v1022, 0
  %v1029 = vsel %vm72, %v1024, 0
  %1031 = vmatprep.subr.bf16.mxu0 0
  %1032 = vmatpush1.bf16.msra.mxu0 %v68
  %1033 = vmatprep.subr.bf16.mxu0 0
  %1034 = vmatpush1.bf16.msra.mxu0 %v69
  %1035 = vmatprep.subr.bf16.mxu0 0
  %1036 = vmatpush1.bf16.msra.mxu0 0
  %1037 = vmatprep.subr.bf16.mxu0 0
  %1038 = vmatpush1.bf16.msra.mxu0 0
  %1039 = vmatprep.subr.bf16.mxu0 0
  %1040 = vmatpush1.bf16.msra.mxu0 0
  %1041 = vmatprep.subr.bf16.mxu0 0
  %1042 = vmatpush1.bf16.msra.mxu0 0
  %1043 = vmatprep.subr.bf16.mxu0 0
  %1044 = vmatpush1.bf16.msra.mxu0 0
  %1045 = vmatprep.subr.bf16.mxu0 0
  %1046 = vmatpush1.bf16.msra.mxu0 0
  %1047 = vmatprep.subr.bf16.mxu0 0
  %1048 = vmatpush1.bf16.msra.mxu0 0
  %1049 = vmatprep.subr.bf16.mxu0 0
  %1050 = vmatpush1.bf16.msra.mxu0 0
  %1051 = vmatprep.subr.bf16.mxu0 0
  %1052 = vmatpush1.bf16.msra.mxu0 0
  %1053 = vmatprep.subr.bf16.mxu0 0
  %1054 = vmatpush1.bf16.msra.mxu0 0
  %1055 = vmatprep.subr.bf16.mxu0 0
  %1056 = vmatpush1.bf16.msra.mxu0 0
  %1057 = vmatprep.subr.bf16.mxu0 0
  %1058 = vmatpush1.bf16.msra.mxu0 0
  %1059 = vmatprep.subr.bf16.mxu0 0
  %1060 = vmatpush1.bf16.msra.mxu0 0
  %1061 = vmatprep.subr.bf16.mxu0 0
  %1062 = vmatpush1.bf16.msra.mxu0 0
  %1063 = vmatprep.mubr.bf16.mxu0 0
  %1064 = vmatmul.mubr.bf16.gmra.mrb[0].mxu0 %v1026
  %v1065 = vpop.f32.mrb[0].mxu0
  %v1066 = vadd.f32 0.0, %v1065
  %v1067 = vpop.f32.mrb[0].mxu0
  %v1068 = vpop.f32.mrb[0].mxu0
  %v1069 = vadd.f32 0.0, %v1068
  %v1070 = vpop.f32.mrb[0].mxu0
  %1071 = vmatprep.mubr.bf16.mxu0 0
  %1072 = vmatmul.mubr.bf16.gmra.mrb[0].mxu0 %v1029
  %v1073 = vpop.f32.mrb[0].mxu0
  %v1074 = vadd.f32 0.0, %v1073
  %v1075 = vpop.f32.mrb[0].mxu0
  %v1076 = vpop.f32.mrb[0].mxu0
  %v1077 = vadd.f32 0.0, %v1076
  %v1078 = vpop.f32.mrb[0].mxu0
  %1079 = vdwg.mxu0
  %v1080 = vadd.f32 %v1013, %v1066
  %v1081 = vadd.f32 %v1014, %v1069
  %v1082 = vadd.f32 %v1015, %v1074
  %v1083 = vadd.f32 %v1016, %v1077
  %v1084 = vxor.u32 %v1080, 2147483648
  %v1085 = vxor.u32 %v1081, 2147483648
  %v1086 = vxor.u32 %v1082, 2147483648
  %v1087 = vxor.u32 %v1083, 2147483648
  %v1088 = vmul.f32 %v1084, 1.442695
  %v1089 = vpow.pop %v1088
  %v1090 = vmul.f32 %v1085, 1.442695
  %v1091 = vpow.pop %v1090
  %v1092 = vmul.f32 %v1086, 1.442695
  %v1093 = vpow.pop %v1092
  %v1094 = vmul.f32 %v1087, 1.442695
  %v1095 = vpow.pop %v1094
  %v1096 = vadd.f32 %v1089, 1.0
  %v1097 = vadd.f32 %v1091, 1.0
  %v1098 = vadd.f32 %v1093, 1.0
  %v1099 = vadd.f32 %v1095, 1.0
  %v1100 = vrcp.pop %v1096
  %v1101 = vmul.f32 1.0, %v1100
  %v1102 = vrcp.pop %v1097
  %v1103 = vmul.f32 1.0, %v1102
  %v1104 = vrcp.pop %v1098
  %v1105 = vmul.f32 1.0, %v1104
  %v1106 = vrcp.pop %v1099
  %v1107 = vmul.f32 1.0, %v1106
  %v1108 = vmul.f32 %v1101, 2.0
  %v1109 = vmul.f32 %v1103, 2.0
  %v1110 = vmul.f32 %v1105, 2.0
  %v1111 = vmul.f32 %v1107, 2.0
  %v1112 = vsub.f32 %v1108, 1.0
  %v1113 = vsub.f32 %v1109, 1.0
  %v1114 = vsub.f32 %v1110, 1.0
  %v1115 = vsub.f32 %v1111, 1.0
  %v1116 = vmul.f32 %v1101, %v965
  %v1117 = vmul.f32 %v1103, %v966
  %v1118 = vmul.f32 %v1105, %v967
  %v1119 = vmul.f32 %v1107, %v968
  %1124 = vrot.lane.b32.xlu0 %v1112, 64
  %v1125 = vpop.permute.xlu0 %1124
  %1126 = vrot.lane.b32.xlu0 %v1113, 64
  %v1127 = vpop.permute.xlu0 %1126
  %1128 = vrot.lane.b32.xlu0 %v1114, 64
  %v1129 = vpop.permute.xlu0 %1128
  %1130 = vrot.lane.b32.xlu0 %v1115, 64
  %v1131 = vpop.permute.xlu0 %1130
  %v1136 = vmul.f32 %v1101, %v1125
  %v1137 = vmul.f32 %v1103, %v1127
  %v1138 = vmul.f32 %v1105, %v1129
  %v1139 = vmul.f32 %v1107, %v1131
  %1144 = vrot.lane.b32.xlu0 %v1136, 32
  %v1145 = vpop.permute.xlu0 %1144
  %1146 = vrot.lane.b32.xlu0 %v1137, 32
  %v1147 = vpop.permute.xlu0 %1146
  %1148 = vrot.lane.b32.xlu0 %v1138, 32
  %v1149 = vpop.permute.xlu0 %1148
  %1150 = vrot.lane.b32.xlu0 %v1139, 32
  %v1151 = vpop.permute.xlu0 %1150
  %v1156 = vadd.f32 %v1116, %v1145
  %v1157 = vadd.f32 %v1117, %v1147
  %v1158 = vadd.f32 %v1118, %v1149
  %v1159 = vadd.f32 %v1119, %v1151
  %v1160 = vtanh.pop %v1156
  %v1161 = vtanh.pop %v1157
  %v1162 = vtanh.pop %v1158
  %v1163 = vtanh.pop %v1159
  %1168 = vrot.lane.b32.xlu0 %v1160, 64
  %v1169 = vpop.permute.xlu0 %1168
  %1170 = vrot.lane.b32.xlu0 %v1161, 64
  %v1171 = vpop.permute.xlu0 %1170
  %1172 = vrot.lane.b32.xlu0 %v1162, 64
  %v1173 = vpop.permute.xlu0 %1172
  %1174 = vrot.lane.b32.xlu0 %v1163, 64
  %v1175 = vpop.permute.xlu0 %1174
  %v1180 = vmul.f32 %v1101, %v1169
  %v1181 = vmul.f32 %v1103, %v1171
  %v1182 = vmul.f32 %v1105, %v1173
  %v1183 = vmul.f32 %v1107, %v1175
  %v1184 = vlaneseq
  %v1185 = vshrl.u32 %v1184, 7
  %v1186 = vsub.s32 2, %v1185
  %v1187 = vrot.slane %v19, %v1186
  %1189 = vrot.lane.b32.xlu0 %v1187, 96
  %v1190 = vpop.permute.xlu0 %1189
  %v1192 = vmul.f32 %v1180, %v1190
  %v1193 = vmul.f32 %v1181, %v1190
  %v1194 = vmul.f32 %v1182, %v1190
  %v1195 = vmul.f32 %v1183, %v1190
  %1200 = vrot.lane.b32.xlu0 %v1192, 32
  %v1201 = vpop.permute.xlu0 %1200
  %1202 = vrot.lane.b32.xlu0 %v1193, 32
  %v1203 = vpop.permute.xlu0 %1202
  %1204 = vrot.lane.b32.xlu0 %v1194, 32
  %v1205 = vpop.permute.xlu0 %1204
  %1206 = vrot.lane.b32.xlu0 %v1195, 32
  %v1207 = vpop.permute.xlu0 %1206
  %v1212 = vsel %vm72, %v1201, 0.0
  %1213 = vadd.xlane.f32.xlu0 %v1212
  %v1214 = vpop.xlane.xlu0 %1213
  %v1215 = vsel %vm72, %v1203, 0.0
  %1216 = vadd.xlane.f32.xlu0 %v1215
  %v1217 = vpop.xlane.xlu0 %1216
  %v1218 = vsel %vm72, %v1205, 0.0
  %1219 = vadd.xlane.f32.xlu0 %v1218
  %v1220 = vpop.xlane.xlu0 %1219
  %v1221 = vsel %vm72, %v1207, 0.0
  %1222 = vadd.xlane.f32.xlu0 %v1221
  %v1223 = vpop.xlane.xlu0 %1222
  %v1224 = vlaneseq
  %v1225 = vshrl.u32 %v1224, 7
  %v1226 = vsub.s32 3, %v1225
  %v1227 = vrot.slane %v19, %v1226
  %v1228 = vadd.f32 %v1214, %v1227
  %v1229 = vadd.f32 %v1217, %v1227
  %v1230 = vadd.f32 %v1220, %v1227
  %v1231 = vadd.f32 %v1223, %v1227
  %vm1232 = vcmask 7168
  %1233 = vst.msk [vmem:[%s3] sm:$0xff] %vm1232, %v1228
  %1234 = vst.msk [vmem:[%s3 + $0x8] sm:$0xff] %vm1232, %v1229
  %1235 = vst.msk [vmem:[%s3 + $0x10] sm:$0xff] %vm1232, %v1230
  %1236 = vst.msk [vmem:[%s3 + $0x18] sm:$0xff] %vm1232, %v1231
  // Predicated region
  $region14: #{lstm_model_forward.1} parent=0 // pred_check
    _
  $region15: #{lstm_model_forward.1} parent=0 // pred_check_branch
    %1238 = sbr.rel (0) target = $region17
  $region16: #{lstm_model_forward.1} parent=0 // pred_region
    _
  $region17: #{lstm_model_forward.1} parent=0 // pred_fallthru
    _
  // Predicated region
  $region18: #{lstm_model_forward.1} parent=0 // pred_check
    _
  $region19: #{lstm_model_forward.1} parent=0 // pred_check_branch
    %1240 = sbr.rel (0) target = $region21
  $region20: #{lstm_model_forward.1} parent=0 // pred_region
    _
  $region21: #{lstm_model_forward.1} parent=0 // pred_fallthru
    _

</llo_original>
